<compile_context>
chip_gen: v7x
topology: tpu7x:2x2x1
jax: 0.10.0
libtpu: 0.0.40
codegen_flags: <defaults>
</compile_context>

<pallas_src>
import functools

import jax
import jax.numpy as jnp
from jax.experimental import pallas as pl
from jax.experimental.pallas import tpu as pltpu


def _round_up(x, m):
    return (x + m - 1) // m * m


def _cdiv(a, b):
    return (a + b - 1) // b


# ----------------------------- kernels -------------------------------------

def _proj_kernel_1d(a_ref, w_ref, bias_ref, o_ref):
    """grid=(M tiles,). Whole K resident: one MXU dot + bias, no accumulation."""
    o_ref[...] = (
        jnp.dot(a_ref[...], w_ref[...], preferred_element_type=jnp.float32)
        + bias_ref[...]
    ).astype(o_ref.dtype)


def _proj_kernel_2d(a_ref, w_ref, bias_ref, o_ref):
    """grid=(M tiles, K tiles). Accumulate into the resident f32 output block."""
    k = pl.program_id(1)

    @pl.when(k == 0)
    def _():
        o_ref[...] = jnp.broadcast_to(bias_ref[...], o_ref.shape)

    o_ref[...] += jnp.dot(a_ref[...], w_ref[...],
                          preferred_element_type=jnp.float32)


# --------------------------- tiling heuristics ------------------------------

_VMEM_WORKSET_CAP = 40 * 1024 * 1024   # keep double-buffered working set v7x-safe


def _workset_bytes(tm, tk, Dp, collapse):
    a = 2 * tm * tk * 2            # double-buffered bf16 A tile
    o = 2 * tm * Dp * 4            # double-buffered f32 output tile
    w = (1 if collapse else 2) * tk * Dp * 2
    return a + o + w + Dp * 4


def _largest_divisor_tile(K_pad, cap):
    c = max(128, cap - cap % 128)
    while c >= 128:
        if K_pad % c == 0:
            return c
        c -= 128
    return 128


def _select_tm(M, tm_max):
    M16 = _round_up(max(M, 1), 16)
    tm = max(16, min(_round_up(tm_max, 16), M16))
    # Ensure >= 2 row tiles when there are enough rows, so the "parallel" M
    # axis can shard across both TensorCores on v7x megacore.
    if M16 >= 32 and tm >= M16:
        tm = max(16, _round_up(_cdiv(M16, 2), 16))
    return tm


def _select_tiles(M, K_pad, Dp, tm_max, k_collapse_max):
    collapse = (K_pad <= k_collapse_max) and (K_pad * Dp * 2 <= 16 * 1024 * 1024)
    tk = K_pad if collapse else _largest_divisor_tile(K_pad, min(k_collapse_max, 2048))
    tm = _select_tm(M, tm_max)
    while tm > 16 and _workset_bytes(tm, tk, Dp, collapse) > _VMEM_WORKSET_CAP:
        tm = max(16, _round_up(tm // 2, 16))
    return tm, tk


# ------------------------------ pallas call ---------------------------------

def patch_proj_matmul(a, w, bias, *, tm, tk):
    """a: (M, K_pad) bf16, w: (K_pad, Dp) bf16, bias: (1, Dp) f32 -> (M, Dp) f32."""
    M, K = a.shape
    Kw, Dp = w.shape
    assert K == Kw and K % tk == 0 and Dp % 128 == 0 and tm % 16 == 0

    collapse = (tk == K)
    m_tiles = _cdiv(M, tm)
    vmem_limit = max(16 * 1024 * 1024,
                     min(48 * 1024 * 1024,
                         _workset_bytes(tm, tk, Dp, collapse) + 8 * 1024 * 1024))

    if collapse:
        kernel = _proj_kernel_1d
        grid = (m_tiles,)
        in_specs = [
            pl.BlockSpec((tm, K), lambda i: (i, 0)),     # A row tile (full K)
            pl.BlockSpec((K, Dp), lambda i: (0, 0)),     # W (fetched once)
            pl.BlockSpec((1, Dp), lambda i: (0, 0)),     # bias (lane-dense)
        ]
        out_specs = pl.BlockSpec((tm, Dp), lambda i: (i, 0))
        dims = ("parallel",)
    else:
        kernel = _proj_kernel_2d
        grid = (m_tiles, K // tk)
        in_specs = [
            pl.BlockSpec((tm, tk), lambda i, k: (i, k)),
            pl.BlockSpec((tk, Dp), lambda i, k: (k, 0)),
            pl.BlockSpec((1, Dp), lambda i, k: (0, 0)),
        ]
        out_specs = pl.BlockSpec((tm, Dp), lambda i, k: (i, 0))
        dims = ("parallel", "arbitrary")

    return pl.pallas_call(
        kernel,
        out_shape=jax.ShapeDtypeStruct((M, Dp), jnp.float32),
        grid_spec=pltpu.PrefetchScalarGridSpec(
            num_scalar_prefetch=0,
            grid=grid,
            in_specs=in_specs,
            out_specs=out_specs,
        ),
        compiler_params=pltpu.CompilerParams(
            dimension_semantics=dims,
            vmem_limit_bytes=vmem_limit,
        ),
    )(a, w, bias)


# ------------------------------- forward ------------------------------------

@functools.partial(
    jax.jit,
    static_argnames=("embed_dim", "t_patch", "patch_size", "compute_dtype",
                     "tm_max", "k_collapse_max"),
)
def _patch_embed_forward(x, w_pad, bias_pad, *, embed_dim, t_patch, patch_size,
                         compute_dtype, tm_max, k_collapse_max):
    B, C, T, H, W = x.shape
    tp, ps = t_patch, patch_size

    if T % tp != 0:
        pad_t = tp - T % tp
        x = jnp.pad(x, ((0, 0), (0, 0), (0, pad_t), (0, 0), (0, 0)))
        T = T + pad_t

    t_blk, h_blk, w_blk = T // tp, H // ps, W // ps
    # Conv3d with stride == kernel drops any spatial remainder.
    x = x[:, :, :t_blk * tp, :h_blk * ps, :w_blk * ps]

    N = t_blk * h_blk * w_blk
    M = B * N
    K = C * tp * ps * ps

    # Rearrange non-overlapping patches into rows, flattened in (C, t, h, w)
    # order to match Conv3d's weight flattening.  (See TODO(synk) at top about
    # fusing this gather into the kernel's input DMA.)
    xp = x.reshape(B, C, t_blk, tp, h_blk, ps, w_blk, ps)
    xp = xp.transpose(0, 2, 4, 6, 1, 3, 5, 7)          # (B, tb, hb, wb, C, tp, ps, ps)
    a = xp.reshape(M, K).astype(compute_dtype)

    K_pad, Dp = w_pad.shape
    if K_pad > K:
        # K tail must stay explicit zeros (undefined bf16 bits could be NaN/Inf
        # and 0 * NaN would poison valid accumulations).
        a = jnp.pad(a, ((0, 0), (0, K_pad - K)))

    tm, tk = _select_tiles(M, K_pad, Dp, tm_max, k_collapse_max)
    out = patch_proj_matmul(a, w_pad, bias_pad, tm=tm, tk=tk)   # (M, Dp) f32
    out = out[:, :embed_dim].reshape(B, N, embed_dim)
    return out


class PatchEmbed3D:
    """JAX/Pallas re-implementation of the PyTorch PatchEmbed3D forward."""

    def __init__(self, img_size=16, time_steps=4, patch_size=8, t_patch=2,
                 in_chans=4, embed_dim=32, key=None,
                 compute_dtype=jnp.bfloat16, tm_max=1024, k_collapse_max=4096):
        self.img_size = img_size
        self.patch_size = patch_size
        self.t_patch = t_patch
        self.in_chans = in_chans
        self.embed_dim = embed_dim
        self.compute_dtype = compute_dtype
        self.tm_max = tm_max
        self.k_collapse_max = k_collapse_max
        self.num_patches = time_steps // t_patch * (img_size // patch_size) ** 2

        if key is None:
            key = jax.random.PRNGKey(0)
        kw, kb = jax.random.split(key)
        # Conv3d weight shape: (D, C, t_patch, patch, patch); bias: (D,)
        fan_in = in_chans * t_patch * patch_size * patch_size
        bound = fan_in ** -0.5
        self.weight = jax.random.uniform(
            kw, (embed_dim, in_chans, t_patch, patch_size, patch_size),
            dtype=jnp.float32, minval=-bound, maxval=bound)
        self.bias = jax.random.uniform(
            kb, (embed_dim,), dtype=jnp.float32, minval=-bound, maxval=bound)

        # Flattened, padded projection matrix built ONCE: K padded to a
        # multiple of 128 (minimal padding), D padded to a multiple of 128
        # (lane-dense output).
        K = fan_in
        K_pad = _round_up(K, 128)
        Dp = _round_up(embed_dim, 128)
        w_mat = self.weight.reshape(embed_dim, K).T                      # (K, D)
        self.w_pad = (jnp.zeros((K_pad, Dp), compute_dtype)
                      .at[:K, :embed_dim].set(w_mat.astype(compute_dtype)))
        self.bias_pad = (jnp.zeros((1, Dp), jnp.float32)
                         .at[0, :embed_dim].set(self.bias))

    def __call__(self, x):
        # x: (B, C, T, H, W)  -- PyTorch NCTHW layout
        B, C, T, H, W = x.shape
        tp, ps = self.t_patch, self.patch_size
        T_eff = T if T % tp == 0 else T + (tp - T % tp)
        t_blk, h_blk, w_blk = T_eff // tp, H // ps, W // ps

        out = _patch_embed_forward(
            x, self.w_pad, self.bias_pad,
            embed_dim=self.embed_dim, t_patch=tp, patch_size=ps,
            compute_dtype=self.compute_dtype,
            tm_max=self.tm_max, k_collapse_max=self.k_collapse_max)
        return out, (t_blk, h_blk, w_blk)


# ----------------------------- references ---------------------------------

def _conv_reference(x, weight, bias, tp, ps):
    """Pure-JAX f32 Conv3d reference."""
    y = jax.lax.conv_general_dilated(
        x, weight,
        window_strides=(tp, ps, ps),
        padding="VALID",
        dimension_numbers=("NCTHW", "OITHW", "NCTHW"),
        precision=jax.lax.Precision.HIGHEST,
    ) + bias[None, :, None, None, None]
    B, D, tb, hb, wb = y.shape
    y = jnp.transpose(y, (0, 2, 3, 4, 1)).reshape(B, -1, D)
    return y, (tb, hb, wb)


def _exact_reference(x, weight, bias, tp, ps, compute_dtype):
    """Same bf16-rounded inputs / f32-accumulation path as the kernel."""
    B, C, T, H, W = x.shape
    if T % tp:
        x = jnp.pad(x, ((0, 0), (0, 0), (0, tp - T % tp), (0, 0), (0, 0)))
        T = x.shape[2]
    t_blk, h_blk, w_blk = T // tp, H // ps, W // ps
    K = C * tp * ps * ps
    D = weight.shape[0]
    xp = x.reshape(B, C, t_blk, tp, h_blk, ps, w_blk, ps)
    a = xp.transpose(0, 2, 4, 6, 1, 3, 5, 7).reshape(-1, K)
    a = a.astype(compute_dtype).astype(jnp.float32)
    wm = weight.reshape(D, K).T.astype(compute_dtype).astype(jnp.float32)
    y = jnp.dot(a, wm, precision=jax.lax.Precision.HIGHEST) + bias[None, :]
    return y.reshape(B, -1, D)


if __name__ == "__main__":
    key = jax.random.PRNGKey(0)
    kx, kp, kx2 = jax.random.split(key, 3)

    # Small shapes consistent with the module's forward.
    B, C, T, H, W = 2, 4, 4, 16, 16
    module = PatchEmbed3D(img_size=H, time_steps=T, patch_size=8, t_patch=2,
                          in_chans=C, embed_dim=32, key=kp)

    x = jax.random.normal(kx, (B, C, T, H, W), dtype=jnp.float32)
    out, (t_blk, h_blk, w_blk) = module(x)
    out = jax.block_until_ready(out)

    ref_exact = _exact_reference(x, module.weight, module.bias,
                                 module.t_patch, module.patch_size,
                                 module.compute_dtype)
    ref_conv, (rt, rh, rw) = _conv_reference(x, module.weight, module.bias,
                                             module.t_patch, module.patch_size)

    assert out.shape == (B, module.num_patches, module.embed_dim), out.shape
    assert (t_blk, h_blk, w_blk) == (rt, rh, rw)
    # Tight check against the identical bf16-input / f32-accum math.
    assert jnp.allclose(out, ref_exact, atol=1e-4, rtol=1e-4), (
        float(jnp.max(jnp.abs(out - ref_exact))))
    # Looser check against the full-f32 Conv3d reference (bf16 input rounding).
    assert jnp.allclose(out, ref_conv, atol=5e-2, rtol=5e-2), (
        float(jnp.max(jnp.abs(out - ref_conv))))

    # Exercise the temporal-padding path (T=3 -> padded to 4), like the
    # original forward's F.pad branch.
    x2 = jax.random.normal(kx2, (B, C, 3, H, W), dtype=jnp.float32)
    out2, dims2 = module(x2)
    out2 = jax.block_until_ready(out2)
    x2p = jnp.pad(x2, ((0, 0), (0, 0), (0, 1), (0, 0), (0, 0)))
    ref2, dims2_ref = _conv_reference(x2p, module.weight, module.bias,
                                      module.t_patch, module.patch_size)
    assert out2.shape == ref2.shape, (out2.shape, ref2.shape)
    assert dims2 == dims2_ref
    assert jnp.allclose(out2, ref2, atol=5e-2, rtol=5e-2), (
        float(jnp.max(jnp.abs(out2 - ref2))))

    print("KERNEL_OK")
</pallas_src>

<mosaic_0001>
module attributes {stable_mosaic.version = 11 : i64} {
  func.func @_proj_kernel_1d(%arg0: i32, %arg1: memref<16x512xbf16, #tpu.memory_space<vmem>>, %arg2: memref<512x128xbf16, #tpu.memory_space<vmem>>, %arg3: memref<1x128xf32, #tpu.memory_space<vmem>>, %arg4: memref<16x128xf32, #tpu.memory_space<vmem>>) attributes {dimension_semantics = [#tpu.dimension_semantics<parallel>], iteration_bounds = array<i64: 1>, scalar_prefetch = 0 : i64, scratch_operands = 0 : i64, tpu.core_type = #tpu.core_type<tc>, window_params = [{transform_indices = @transform_0, window_bounds = array<i64: 16, 512>}, {pipeline_mode = #tpu.pipeline_mode<synchronous>, transform_indices = @transform_1, window_bounds = array<i64: 512, 128>}, {pipeline_mode = #tpu.pipeline_mode<synchronous>, transform_indices = @transform_2, window_bounds = array<i64: 1, 128>}, {transform_indices = @transform_3, window_bounds = array<i64: 16, 128>}]} {
    %c0 = arith.constant 0 : index
    %c0_0 = arith.constant 0 : index
    %0 = vector.load %arg1[%c0, %c0_0] : memref<16x512xbf16, #tpu.memory_space<vmem>>, vector<16x512xbf16>
    %c0_1 = arith.constant 0 : index
    %c0_2 = arith.constant 0 : index
    %1 = vector.load %arg2[%c0_1, %c0_2] : memref<512x128xbf16, #tpu.memory_space<vmem>>, vector<512x128xbf16>
    %cst = arith.constant dense<0.000000e+00> : vector<16x128xf32>
    %2 = tpu.matmul %0, %1, %cst {dimension_numbers = #tpu.dot_dimension_numbers<[1], [0], [0], [1], [0, 0, 1, 1], [], []>} : vector<16x512xbf16>, vector<512x128xbf16>, vector<16x128xf32> -> vector<16x128xf32>
    %c0_3 = arith.constant 0 : index
    %c0_4 = arith.constant 0 : index
    %3 = vector.load %arg3[%c0_3, %c0_4] : memref<1x128xf32, #tpu.memory_space<vmem>>, vector<1x128xf32>
    %4 = vector.broadcast %3 : vector<1x128xf32> to vector<16x128xf32>
    %5 = arith.addf %2, %4 : vector<16x128xf32>
    %c0_5 = arith.constant 0 : index
    %c0_6 = arith.constant 0 : index
    %6 = vector.load %arg4[%c0_5, %c0_6] : memref<16x128xf32, #tpu.memory_space<vmem>>, vector<16x128xf32>
    tpu.vector_store %arg4[%c0_5, %c0_6], %5 {strides = array<i32>} : memref<16x128xf32, #tpu.memory_space<vmem>>, vector<16x128xf32>,
    return
  }
  func.func @transform_0(%arg0: i32) -> (i32, i32) {
    %c0_i32 = arith.constant 0 : i32
    %c0_i32_0 = arith.constant 0 : i32
    return %arg0, %c0_i32 : i32, i32
  }
  func.func @transform_1(%arg0: i32) -> (i32, i32) {
    %c0_i32 = arith.constant 0 : i32
    %c0_i32_0 = arith.constant 0 : i32
    %c0_i32_1 = arith.constant 0 : i32
    return %c0_i32, %c0_i32_0 : i32, i32
  }
  func.func @transform_2(%arg0: i32) -> (i32, i32) {
    %c0_i32 = arith.constant 0 : i32
    %c0_i32_0 = arith.constant 0 : i32
    %c0_i32_1 = arith.constant 0 : i32
    return %c0_i32, %c0_i32_0 : i32, i32
  }
  func.func @transform_3(%arg0: i32) -> (i32, i32) {
    %c0_i32 = arith.constant 0 : i32
    %c0_i32_0 = arith.constant 0 : i32
    return %arg0, %c0_i32 : i32, i32
  }
}

</mosaic_0001>

<llo_original>
// kernel: _patch_embed_forward.1
$region0: #{_patch_embed_forward.1}
  #allocation0 [shape = 'u32[]', space=smem, size = 0x4, offset = 0x4, fixed_abs, tag = 'smem constant byte address 0x4 - core index']
  #allocation1 [shape = 'u32[144,128]{1,0:T(1,128)}', space=vmem, size = 0x12000, scoped, tag = 'internal scratch']
  %s0 = inlined_call_operand.vmem [shape: bf16[16,512], index: 0, kind: input, shape index: {}]
  %s1 = inlined_call_operand.vmem [shape: bf16[512,128], index: 1, kind: input, shape index: {}]
  %s2 = inlined_call_operand.vmem [shape: f32[1,128], index: 2, kind: input, shape index: {}]
  %s3 = inlined_call_operand.vmem [shape: f32[16,128], index: 3, kind: output, shape index: {}]
  %s4 = sld [smem:[#allocation0]]
  $region22: #{_patch_embed_forward.1} parent=0
    _
  %s6 = ssub.s32 1, %s4
  %s7 = scalar_select 0, %s6, %s4
  // Predicated region
  $region2: #{_patch_embed_forward.1} parent=0 // pred_check
    _
  $region3: #{_patch_embed_forward.1} parent=0 // pred_check_branch
    %9 = sbr.rel (0) target = $region5
  $region4: #{_patch_embed_forward.1} parent=0 // pred_region
    _
  $region5: #{_patch_embed_forward.1} parent=0 // pred_fallthru
    _
  // Predicated region
  $region6: #{_patch_embed_forward.1} parent=0 // pred_check
    _
  $region7: #{_patch_embed_forward.1} parent=0 // pred_check_branch
    %11 = sbr.rel (0) target = $region9
  $region8: #{_patch_embed_forward.1} parent=0 // pred_region
    _
  $region9: #{_patch_embed_forward.1} parent=0 // pred_fallthru
    _
  // Predicated region
  $region10: #{_patch_embed_forward.1} parent=0 // pred_check
    _
  $region11: #{_patch_embed_forward.1} parent=0 // pred_check_branch
    %13 = sbr.rel (0) target = $region13
  $region12: #{_patch_embed_forward.1} parent=0 // pred_region
    _
  $region13: #{_patch_embed_forward.1} parent=0 // pred_fallthru
    _
  %v15 = vld [vmem:[%s0] sm:$0xff]
  %v16 = vld [vmem:[%s0 + $0x8] sm:$0xff]
  %v17 = vld [vmem:[%s0 + $0x10] sm:$0xff]
  %v18 = vld [vmem:[%s0 + $0x18] sm:$0xff]
  %v19 = vld [vmem:[%s1] sm:$0xf]
  %v20 = vld [vmem:[%s1 + $0x4] sm:$0xf]
  %v21 = vld [vmem:[%s1 + $0x8] sm:$0xf]
  %v22 = vld [vmem:[%s1 + $0xc] sm:$0xf]
  %v23 = vld [vmem:[%s1 + $0x10] sm:$0xf]
  %v24 = vld [vmem:[%s1 + $0x14] sm:$0xf]
  %v25 = vld [vmem:[%s1 + $0x18] sm:$0xf]
  %v26 = vld [vmem:[%s1 + $0x1c] sm:$0xf]
  %v27 = vld [vmem:[%s1 + $0x20] sm:$0xf]
  %v28 = vld [vmem:[%s1 + $0x24] sm:$0xf]
  %v29 = vld [vmem:[%s1 + $0x28] sm:$0xf]
  %v30 = vld [vmem:[%s1 + $0x2c] sm:$0xf]
  %v31 = vld [vmem:[%s1 + $0x30] sm:$0xf]
  %v32 = vld [vmem:[%s1 + $0x34] sm:$0xf]
  %v33 = vld [vmem:[%s1 + $0x38] sm:$0xf]
  %v34 = vld [vmem:[%s1 + $0x3c] sm:$0xf]
  %v35 = vld [vmem:[%s1 + $0x40] sm:$0xf]
  %v36 = vld [vmem:[%s1 + $0x44] sm:$0xf]
  %v37 = vld [vmem:[%s1 + $0x48] sm:$0xf]
  %v38 = vld [vmem:[%s1 + $0x4c] sm:$0xf]
  %v39 = vld [vmem:[%s1 + $0x50] sm:$0xf]
  %v40 = vld [vmem:[%s1 + $0x54] sm:$0xf]
  %v41 = vld [vmem:[%s1 + $0x58] sm:$0xf]
  %v42 = vld [vmem:[%s1 + $0x5c] sm:$0xf]
  %v43 = vld [vmem:[%s1 + $0x60] sm:$0xf]
  %v44 = vld [vmem:[%s1 + $0x64] sm:$0xf]
  %v45 = vld [vmem:[%s1 + $0x68] sm:$0xf]
  %v46 = vld [vmem:[%s1 + $0x6c] sm:$0xf]
  %v47 = vld [vmem:[%s1 + $0x70] sm:$0xf]
  %v48 = vld [vmem:[%s1 + $0x74] sm:$0xf]
  %v49 = vld [vmem:[%s1 + $0x78] sm:$0xf]
  %v50 = vld [vmem:[%s1 + $0x7c] sm:$0xf]
  %v51 = vld [vmem:[%s1 + $0x80] sm:$0xf]
  %v52 = vld [vmem:[%s1 + $0x84] sm:$0xf]
  %v53 = vld [vmem:[%s1 + $0x88] sm:$0xf]
  %v54 = vld [vmem:[%s1 + $0x8c] sm:$0xf]
  %v55 = vld [vmem:[%s1 + $0x90] sm:$0xf]
  %v56 = vld [vmem:[%s1 + $0x94] sm:$0xf]
  %v57 = vld [vmem:[%s1 + $0x98] sm:$0xf]
  %v58 = vld [vmem:[%s1 + $0x9c] sm:$0xf]
  %v59 = vld [vmem:[%s1 + $0xa0] sm:$0xf]
  %v60 = vld [vmem:[%s1 + $0xa4] sm:$0xf]
  %v61 = vld [vmem:[%s1 + $0xa8] sm:$0xf]
  %v62 = vld [vmem:[%s1 + $0xac] sm:$0xf]
  %v63 = vld [vmem:[%s1 + $0xb0] sm:$0xf]
  %v64 = vld [vmem:[%s1 + $0xb4] sm:$0xf]
  %v65 = vld [vmem:[%s1 + $0xb8] sm:$0xf]
  %v66 = vld [vmem:[%s1 + $0xbc] sm:$0xf]
  %v67 = vld [vmem:[%s1 + $0xc0] sm:$0xf]
  %v68 = vld [vmem:[%s1 + $0xc4] sm:$0xf]
  %v69 = vld [vmem:[%s1 + $0xc8] sm:$0xf]
  %v70 = vld [vmem:[%s1 + $0xcc] sm:$0xf]
  %v71 = vld [vmem:[%s1 + $0xd0] sm:$0xf]
  %v72 = vld [vmem:[%s1 + $0xd4] sm:$0xf]
  %v73 = vld [vmem:[%s1 + $0xd8] sm:$0xf]
  %v74 = vld [vmem:[%s1 + $0xdc] sm:$0xf]
  %v75 = vld [vmem:[%s1 + $0xe0] sm:$0xf]
  %v76 = vld [vmem:[%s1 + $0xe4] sm:$0xf]
  %v77 = vld [vmem:[%s1 + $0xe8] sm:$0xf]
  %v78 = vld [vmem:[%s1 + $0xec] sm:$0xf]
  %v79 = vld [vmem:[%s1 + $0xf0] sm:$0xf]
  %v80 = vld [vmem:[%s1 + $0xf4] sm:$0xf]
  %v81 = vld [vmem:[%s1 + $0xf8] sm:$0xf]
  %v82 = vld [vmem:[%s1 + $0xfc] sm:$0xf]
  %v83 = vld [vmem:[%s2] sm:$0x1]
  %v85 = vlaneseq
  %v86 = vshrl.u32 %v85, 7
  %v87 = vsub.s32 0, %v86
  %v88 = vrot.slane %v83, %v87
  %v94 = vunpack.c.l.b16 %v15
  %v95 = vunpack.c.h.b16 %v15
  %v96 = vunpack.c.l.b16 %v16
  %v97 = vunpack.c.h.b16 %v16
  %v98 = vunpack.c.l.b16 %v17
  %v99 = vunpack.c.h.b16 %v17
  %v100 = vunpack.c.l.b16 %v18
  %v101 = vunpack.c.h.b16 %v18
  %v102 = vpack.c.b16 %v98, %v94
  %v103 = vpack.c.b16 %v99, %v95
  %v104 = vpack.c.b16 %v100, %v96
  %v105 = vpack.c.b16 %v101, %v97
  %v174 = vunpack.c.l.b16 %v19
  %v175 = vunpack.c.l.b16 %v20
  %v176 = vunpack.c.l.b16 %v21
  %v177 = vunpack.c.l.b16 %v22
  %v178 = vunpack.c.l.b16 %v23
  %v179 = vunpack.c.l.b16 %v24
  %v180 = vunpack.c.l.b16 %v25
  %v181 = vunpack.c.l.b16 %v26
  %v182 = vunpack.c.l.b16 %v27
  %v183 = vunpack.c.l.b16 %v28
  %v184 = vunpack.c.l.b16 %v29
  %v185 = vunpack.c.l.b16 %v30
  %v186 = vunpack.c.l.b16 %v31
  %v187 = vunpack.c.l.b16 %v32
  %v188 = vunpack.c.l.b16 %v33
  %v189 = vunpack.c.l.b16 %v34
  %v190 = vunpack.c.l.b16 %v35
  %v191 = vunpack.c.l.b16 %v36
  %v192 = vunpack.c.l.b16 %v37
  %v193 = vunpack.c.l.b16 %v38
  %v194 = vunpack.c.l.b16 %v39
  %v195 = vunpack.c.l.b16 %v40
  %v196 = vunpack.c.l.b16 %v41
  %v197 = vunpack.c.l.b16 %v42
  %v198 = vunpack.c.l.b16 %v43
  %v199 = vunpack.c.l.b16 %v44
  %v200 = vunpack.c.l.b16 %v45
  %v201 = vunpack.c.l.b16 %v46
  %v202 = vunpack.c.l.b16 %v47
  %v203 = vunpack.c.l.b16 %v48
  %v204 = vunpack.c.l.b16 %v49
  %v205 = vunpack.c.l.b16 %v50
  %v206 = vunpack.c.l.b16 %v51
  %v207 = vunpack.c.l.b16 %v52
  %v208 = vunpack.c.l.b16 %v53
  %v209 = vunpack.c.l.b16 %v54
  %v210 = vunpack.c.l.b16 %v55
  %v211 = vunpack.c.l.b16 %v56
  %v212 = vunpack.c.l.b16 %v57
  %v213 = vunpack.c.l.b16 %v58
  %v214 = vunpack.c.l.b16 %v59
  %v215 = vunpack.c.l.b16 %v60
  %v216 = vunpack.c.l.b16 %v61
  %v217 = vunpack.c.l.b16 %v62
  %v218 = vunpack.c.l.b16 %v63
  %v219 = vunpack.c.l.b16 %v64
  %v220 = vunpack.c.l.b16 %v65
  %v221 = vunpack.c.l.b16 %v66
  %v222 = vunpack.c.l.b16 %v67
  %v223 = vunpack.c.l.b16 %v68
  %v224 = vunpack.c.l.b16 %v69
  %v225 = vunpack.c.l.b16 %v70
  %v226 = vunpack.c.l.b16 %v71
  %v227 = vunpack.c.l.b16 %v72
  %v228 = vunpack.c.l.b16 %v73
  %v229 = vunpack.c.l.b16 %v74
  %v230 = vunpack.c.l.b16 %v75
  %v231 = vunpack.c.l.b16 %v76
  %v232 = vunpack.c.l.b16 %v77
  %v233 = vunpack.c.l.b16 %v78
  %v234 = vunpack.c.l.b16 %v79
  %v235 = vunpack.c.l.b16 %v80
  %v236 = vunpack.c.l.b16 %v81
  %v237 = vunpack.c.l.b16 %v82
  %v238 = vpack.c.b16 %v175, %v174
  %v239 = vpack.c.b16 %v177, %v176
  %v240 = vpack.c.b16 %v179, %v178
  %v241 = vpack.c.b16 %v181, %v180
  %v242 = vpack.c.b16 %v183, %v182
  %v243 = vpack.c.b16 %v185, %v184
  %v244 = vpack.c.b16 %v187, %v186
  %v245 = vpack.c.b16 %v189, %v188
  %v246 = vpack.c.b16 %v191, %v190
  %v247 = vpack.c.b16 %v193, %v192
  %v248 = vpack.c.b16 %v195, %v194
  %v249 = vpack.c.b16 %v197, %v196
  %v250 = vpack.c.b16 %v199, %v198
  %v251 = vpack.c.b16 %v201, %v200
  %v252 = vpack.c.b16 %v203, %v202
  %v253 = vpack.c.b16 %v205, %v204
  %v254 = vpack.c.b16 %v207, %v206
  %v255 = vpack.c.b16 %v209, %v208
  %v256 = vpack.c.b16 %v211, %v210
  %v257 = vpack.c.b16 %v213, %v212
  %v258 = vpack.c.b16 %v215, %v214
  %v259 = vpack.c.b16 %v217, %v216
  %v260 = vpack.c.b16 %v219, %v218
  %v261 = vpack.c.b16 %v221, %v220
  %v262 = vpack.c.b16 %v223, %v222
  %v263 = vpack.c.b16 %v225, %v224
  %v264 = vpack.c.b16 %v227, %v226
  %v265 = vpack.c.b16 %v229, %v228
  %v266 = vpack.c.b16 %v231, %v230
  %v267 = vpack.c.b16 %v233, %v232
  %v268 = vpack.c.b16 %v235, %v234
  %v269 = vpack.c.b16 %v237, %v236
  %302 = vmatprep.subr.bf16.mxu0 0
  %303 = vmatpush1.bf16.msra.mxu0 %v238
  %304 = vmatprep.subr.bf16.mxu0 0
  %305 = vmatpush1.bf16.msra.mxu0 %v239
  %306 = vmatprep.subr.bf16.mxu0 0
  %307 = vmatpush1.bf16.msra.mxu0 %v240
  %308 = vmatprep.subr.bf16.mxu0 0
  %309 = vmatpush1.bf16.msra.mxu0 %v241
  %310 = vmatprep.subr.bf16.mxu0 0
  %311 = vmatpush1.bf16.msra.mxu0 %v242
  %312 = vmatprep.subr.bf16.mxu0 0
  %313 = vmatpush1.bf16.msra.mxu0 %v243
  %314 = vmatprep.subr.bf16.mxu0 0
  %315 = vmatpush1.bf16.msra.mxu0 %v244
  %316 = vmatprep.subr.bf16.mxu0 0
  %317 = vmatpush1.bf16.msra.mxu0 %v245
  %318 = vmatprep.subr.bf16.mxu0 0
  %319 = vmatpush1.bf16.msra.mxu0 %v246
  %320 = vmatprep.subr.bf16.mxu0 0
  %321 = vmatpush1.bf16.msra.mxu0 %v247
  %322 = vmatprep.subr.bf16.mxu0 0
  %323 = vmatpush1.bf16.msra.mxu0 %v248
  %324 = vmatprep.subr.bf16.mxu0 0
  %325 = vmatpush1.bf16.msra.mxu0 %v249
  %326 = vmatprep.subr.bf16.mxu0 0
  %327 = vmatpush1.bf16.msra.mxu0 %v250
  %328 = vmatprep.subr.bf16.mxu0 0
  %329 = vmatpush1.bf16.msra.mxu0 %v251
  %330 = vmatprep.subr.bf16.mxu0 0
  %331 = vmatpush1.bf16.msra.mxu0 %v252
  %332 = vmatprep.subr.bf16.mxu0 0
  %333 = vmatpush1.bf16.msra.mxu0 %v253
  %334 = vmatprep.mubr.bf16.mxu0 %v103
  %335 = vmatmul.mubr.bf16.gmra.mrb[0].mxu0 %v102
  %v336 = vpop.f32.mrb[0].mxu0
  %v337 = vadd.f32 %v88, %v336
  %v338 = vpop.f32.mrb[0].mxu0
  %v339 = vpop.f32.mrb[0].mxu0
  %v340 = vadd.f32 %v88, %v339
  %v341 = vpop.f32.mrb[0].mxu0
  %342 = vdwg.mxu0
  %343 = vmatprep.subr.bf16.mxu0 0
  %344 = vmatpush1.bf16.msra.mxu0 %v254
  %345 = vmatprep.subr.bf16.mxu0 0
  %346 = vmatpush1.bf16.msra.mxu0 %v255
  %347 = vmatprep.subr.bf16.mxu0 0
  %348 = vmatpush1.bf16.msra.mxu0 %v256
  %349 = vmatprep.subr.bf16.mxu0 0
  %350 = vmatpush1.bf16.msra.mxu0 %v257
  %351 = vmatprep.subr.bf16.mxu0 0
  %352 = vmatpush1.bf16.msra.mxu0 %v258
  %353 = vmatprep.subr.bf16.mxu0 0
  %354 = vmatpush1.bf16.msra.mxu0 %v259
  %355 = vmatprep.subr.bf16.mxu0 0
  %356 = vmatpush1.bf16.msra.mxu0 %v260
  %357 = vmatprep.subr.bf16.mxu0 0
  %358 = vmatpush1.bf16.msra.mxu0 %v261
  %359 = vmatprep.subr.bf16.mxu0 0
  %360 = vmatpush1.bf16.msra.mxu0 %v262
  %361 = vmatprep.subr.bf16.mxu0 0
  %362 = vmatpush1.bf16.msra.mxu0 %v263
  %363 = vmatprep.subr.bf16.mxu0 0
  %364 = vmatpush1.bf16.msra.mxu0 %v264
  %365 = vmatprep.subr.bf16.mxu0 0
  %366 = vmatpush1.bf16.msra.mxu0 %v265
  %367 = vmatprep.subr.bf16.mxu0 0
  %368 = vmatpush1.bf16.msra.mxu0 %v266
  %369 = vmatprep.subr.bf16.mxu0 0
  %370 = vmatpush1.bf16.msra.mxu0 %v267
  %371 = vmatprep.subr.bf16.mxu0 0
  %372 = vmatpush1.bf16.msra.mxu0 %v268
  %373 = vmatprep.subr.bf16.mxu0 0
  %374 = vmatpush1.bf16.msra.mxu0 %v269
  %375 = vmatprep.mubr.bf16.mxu0 %v105
  %376 = vmatmul.mubr.bf16.gmra.mrb[0].mxu0 %v104
  %v377 = vpop.f32.mrb[0].mxu0
  %v378 = vadd.f32 %v337, %v377
  %v379 = vpop.f32.mrb[0].mxu0
  %v380 = vpop.f32.mrb[0].mxu0
  %v381 = vadd.f32 %v340, %v380
  %v382 = vpop.f32.mrb[0].mxu0
  %383 = vdwg.mxu0
  %384 = vst [vmem:[%s3] sm:$0xff] %v378
  %385 = vst [vmem:[%s3 + $0x8] sm:$0xff] %v381
  // Predicated region
  $region14: #{_patch_embed_forward.1} parent=0 // pred_check
    _
  $region15: #{_patch_embed_forward.1} parent=0 // pred_check_branch
    %387 = sbr.rel (0) target = $region17
  $region16: #{_patch_embed_forward.1} parent=0 // pred_region
    _
  $region17: #{_patch_embed_forward.1} parent=0 // pred_fallthru
    _
  // Predicated region
  $region18: #{_patch_embed_forward.1} parent=0 // pred_check
    _
  $region19: #{_patch_embed_forward.1} parent=0 // pred_check_branch
    %389 = sbr.rel (0) target = $region21
  $region20: #{_patch_embed_forward.1} parent=0 // pred_region
    _
  $region21: #{_patch_embed_forward.1} parent=0 // pred_fallthru
    _

</llo_original>
